<compile_context>
chip_gen: v7x
topology: tpu7x:2x2x1
jax: 0.10.0
libtpu: 0.0.40
codegen_flags: <defaults>
</compile_context>

<pallas_src>
import jax
import jax.numpy as jnp
from jax import lax
from jax.experimental import pallas as pl
from jax.experimental.pallas import tpu as pltpu


def encoder_kernel(emb_ref, wih_t_ref, whh_t_ref, bias_ref, out_ref):
    """Input projection (one MXU matmul) + fully unrolled LSTM recurrence.

    emb_ref   : (B, L*E)  f32   gathered embeddings (time axis = B)
    wih_t_ref : (L*E, 4H) f32   W_ih^T
    whh_t_ref : (H, 4H)   bf16  W_hh^T (recurrent RHS, bf16 MXU pass)
    bias_ref  : (1, 4H)   f32   b_ih + b_hh
    out_ref   : (B, H)    f32   hidden state after each "time" step
    """
    B = emb_ref.shape[0]
    H = out_ref.shape[1]

    # One-time input projection for all steps (off the serial path):
    #   xg = embeds @ W_ih^T + (b_ih + b_hh)     -> (B, 4H), one f32 vreg.
    xg = jnp.dot(emb_ref[...], wih_t_ref[...],
                 preferred_element_type=jnp.float32) + bias_ref[...]

    whh_t = whh_t_ref[...]                                     # (H, 4H) bf16

    h = jnp.zeros((1, H), jnp.float32)
    c = jnp.zeros((1, H), jnp.float32)

    # B is static; full unroll with static indices gives the scheduler
    # visibility across the whole serial dependency chain.
    for t in range(B):
        # Recurrent contribution: single native-bf16 MXU pass, f32 accumulate.
        rec = jnp.dot(h.astype(jnp.bfloat16), whh_t,
                      preferred_element_type=jnp.float32)      # (1, 4H)
        gates = xg[t:t + 1, :] + rec                           # (1, 4H) f32

        # Two full-vreg EUP passes instead of four sliced ones.
        s = jax.nn.sigmoid(gates)
        tg = jnp.tanh(gates)
        i = s[:, 0:H]
        f = s[:, H:2 * H]
        o = s[:, 3 * H:4 * H]
        g = tg[:, 2 * H:3 * H]

        c = f * c + i * g
        h = o * jnp.tanh(c)
        out_ref[t:t + 1, :] = h


@jax.jit
def encoder_forward(ids, emb_table, w_ih, w_hh, b_ih, b_hh):
    """ids: (B, L) int32.  Returns h_d: (B, H) float32."""
    B, L = ids.shape
    V, E = emb_table.shape
    H4 = w_ih.shape[0]
    H = H4 // 4

    # Data-dependent embedding gather stays in XLA (no clean whole-block
    # BlockSpec expression; not worth scalar-prefetch machinery at this size).
    embeds = emb_table[ids].reshape(B, L * E).astype(jnp.float32)   # (B, L*E)

    wih_t = w_ih.T.astype(jnp.float32)                              # (L*E, 4H)
    whh_t = w_hh.T.astype(jnp.bfloat16)                             # (H, 4H)
    bias = (b_ih + b_hh).reshape(1, H4).astype(jnp.float32)         # (1, 4H)

    # All operands are tiny (<= 64 KiB) -> no grid, whole-array VMEM blocks.
    return pl.pallas_call(
        encoder_kernel,
        out_shape=jax.ShapeDtypeStruct((B, H), jnp.float32),
        in_specs=[pl.BlockSpec(memory_space=pltpu.MemorySpace.VMEM)] * 4,
        out_specs=pl.BlockSpec(memory_space=pltpu.MemorySpace.VMEM),
    )(embeds, wih_t, whh_t, bias)


def encoder_reference(ids, emb_table, w_ih, w_hh, b_ih, b_hh):
    """Pure-JAX (f32) mirror of the PyTorch forward, for correctness checks."""
    B = ids.shape[0]
    H = w_hh.shape[1]
    embeds = emb_table[ids].reshape(B, -1)                 # (B, L*E)

    def step(carry, x_t):
        h, c = carry
        gates = x_t @ w_ih.T + b_ih + h @ w_hh.T + b_hh
        i, f, g, o = jnp.split(gates, 4)
        i, f, o = jax.nn.sigmoid(i), jax.nn.sigmoid(f), jax.nn.sigmoid(o)
        g = jnp.tanh(g)
        c = f * c + i * g
        h = o * jnp.tanh(c)
        return (h, c), h

    init = (jnp.zeros((H,), jnp.float32), jnp.zeros((H,), jnp.float32))
    _, hs = lax.scan(step, init, embeds)
    return hs                                              # (B, H)


if __name__ == "__main__":
    # Small shapes consistent with the module.
    batch = 8           # LSTM "sequence" length (see note above)
    input_len = 8       # L
    embedding_dim = 16  # E
    vocab_size = 32     # V
    encoding_dim = 32   # H   (=> input_size L*E = 128, 4H = 128)

    key = jax.random.PRNGKey(0)
    k_ids, k_emb, k_wih, k_whh, k_bih, k_bhh = jax.random.split(key, 6)

    ids = jax.random.randint(k_ids, (batch, input_len), 0, vocab_size,
                             dtype=jnp.int32)

    # Embedding: N(0, 1), row 0 zeroed (padding_idx=0).
    # NOTE: padding_idx=0 is honored because row 0 is zeroed here; the kernel
    # itself does not enforce it.
    emb_table = jax.random.normal(k_emb, (vocab_size, embedding_dim),
                                  dtype=jnp.float32)
    emb_table = emb_table.at[0].set(0.0)

    # LSTM params: PyTorch default init U(-1/sqrt(H), 1/sqrt(H)).
    bound = 1.0 / jnp.sqrt(jnp.float32(encoding_dim))
    in_features = input_len * embedding_dim
    w_ih = jax.random.uniform(k_wih, (4 * encoding_dim, in_features),
                              minval=-bound, maxval=bound, dtype=jnp.float32)
    w_hh = jax.random.uniform(k_whh, (4 * encoding_dim, encoding_dim),
                              minval=-bound, maxval=bound, dtype=jnp.float32)
    b_ih = jax.random.uniform(k_bih, (4 * encoding_dim,),
                              minval=-bound, maxval=bound, dtype=jnp.float32)
    b_hh = jax.random.uniform(k_bhh, (4 * encoding_dim,),
                              minval=-bound, maxval=bound, dtype=jnp.float32)

    h_d = encoder_forward(ids, emb_table, w_ih, w_hh, b_ih, b_hh)
    h_d = jax.block_until_ready(h_d)

    h_ref = encoder_reference(ids, emb_table, w_ih, w_hh, b_ih, b_hh)
    assert h_d.shape == (batch, encoding_dim)
    # Tolerance relaxed vs the all-f32 version: the recurrent matmul runs in
    # bf16 (f32 accumulate) per the performance review.
    assert jnp.allclose(h_d, h_ref, atol=5e-3, rtol=5e-3), (
        f"max abs err {jnp.max(jnp.abs(h_d - h_ref))}")

    print("KERNEL_OK")
</pallas_src>

<mosaic_0001>
module attributes {stable_mosaic.version = 11 : i64} {
  func.func @encoder_kernel(%arg0: memref<8x128xf32, #tpu.memory_space<vmem>>, %arg1: memref<128x128xf32, #tpu.memory_space<vmem>>, %arg2: memref<32x128xbf16, #tpu.memory_space<vmem>>, %arg3: memref<1x128xf32, #tpu.memory_space<vmem>>, %arg4: memref<8x32xf32, #tpu.memory_space<vmem>>) attributes {dimension_semantics = [], scalar_prefetch = 0 : i64, scratch_operands = 0 : i64, tpu.core_type = #tpu.core_type<tc>} {
    %c0 = arith.constant 0 : index
    %c0_0 = arith.constant 0 : index
    %0 = vector.load %arg0[%c0, %c0_0] : memref<8x128xf32, #tpu.memory_space<vmem>>, vector<8x128xf32>
    %c0_1 = arith.constant 0 : index
    %c0_2 = arith.constant 0 : index
    %1 = vector.load %arg1[%c0_1, %c0_2] : memref<128x128xf32, #tpu.memory_space<vmem>>, vector<128x128xf32>
    %cst = arith.constant dense<0.000000e+00> : vector<8x128xf32>
    %2 = tpu.matmul %0, %1, %cst {dimension_numbers = #tpu.dot_dimension_numbers<[1], [0], [0], [1], [0, 0, 1, 1], [], []>} : vector<8x128xf32>, vector<128x128xf32>, vector<8x128xf32> -> vector<8x128xf32>
    %c0_3 = arith.constant 0 : index
    %c0_4 = arith.constant 0 : index
    %3 = vector.load %arg3[%c0_3, %c0_4] : memref<1x128xf32, #tpu.memory_space<vmem>>, vector<1x128xf32>
    %4 = vector.broadcast %3 : vector<1x128xf32> to vector<8x128xf32>
    %5 = arith.addf %2, %4 : vector<8x128xf32>
    %c0_5 = arith.constant 0 : index
    %c0_6 = arith.constant 0 : index
    %6 = vector.load %arg2[%c0_5, %c0_6] : memref<32x128xbf16, #tpu.memory_space<vmem>>, vector<32x128xbf16>
    %cst_7 = arith.constant 0.000000e+00 : f32
    %7 = vector.broadcast %cst_7 : f32 to vector<1x32xf32>
    %cst_8 = arith.constant 0.000000e+00 : f32
    %8 = vector.broadcast %cst_8 : f32 to vector<1x32xf32>
    %9 = arith.truncf %7 : vector<1x32xf32> to vector<1x32xbf16>
    %cst_9 = arith.constant dense<0.000000e+00> : vector<1x128xf32>
    %10 = tpu.matmul %9, %6, %cst_9 {dimension_numbers = #tpu.dot_dimension_numbers<[1], [0], [0], [1], [0, 0, 1, 1], [], []>} : vector<1x32xbf16>, vector<32x128xbf16>, vector<1x128xf32> -> vector<1x128xf32>
    %11 = vector.extract_strided_slice %5 {offsets = [0, 0], sizes = [1, 128], strides = [1, 1]} : vector<8x128xf32> to vector<1x128xf32>
    %12 = arith.addf %11, %10 : vector<1x128xf32>
    %13 = arith.negf %12 : vector<1x128xf32>
    %14 = math.exp %13 : vector<1x128xf32>
    %cst_10 = arith.constant 1.000000e+00 : f32
    %15 = vector.broadcast %cst_10 : f32 to vector<1x128xf32>
    %16 = arith.addf %15, %14 : vector<1x128xf32>
    %17 = arith.divf %15, %16 : vector<1x128xf32>
    %18 = math.tanh %12 : vector<1x128xf32>
    %19 = vector.extract_strided_slice %17 {offsets = [0, 0], sizes = [1, 32], strides = [1, 1]} : vector<1x128xf32> to vector<1x32xf32>
    %20 = vector.extract_strided_slice %17 {offsets = [0, 32], sizes = [1, 32], strides = [1, 1]} : vector<1x128xf32> to vector<1x32xf32>
    %21 = vector.extract_strided_slice %17 {offsets = [0, 96], sizes = [1, 32], strides = [1, 1]} : vector<1x128xf32> to vector<1x32xf32>
    %22 = vector.extract_strided_slice %18 {offsets = [0, 64], sizes = [1, 32], strides = [1, 1]} : vector<1x128xf32> to vector<1x32xf32>
    %23 = arith.mulf %20, %8 : vector<1x32xf32>
    %24 = arith.mulf %19, %22 : vector<1x32xf32>
    %25 = arith.addf %23, %24 : vector<1x32xf32>
    %26 = math.tanh %25 : vector<1x32xf32>
    %27 = arith.mulf %21, %26 : vector<1x32xf32>
    %c0_11 = arith.constant 0 : index
    %c0_12 = arith.constant 0 : index
    %28 = vector.load %arg4[%c0_11, %c0_12] : memref<8x32xf32, #tpu.memory_space<vmem>>, vector<1x32xf32>
    tpu.vector_store %arg4[%c0_11, %c0_12], %27 {strides = array<i32>} : memref<8x32xf32, #tpu.memory_space<vmem>>, vector<1x32xf32>,
    %29 = arith.truncf %27 : vector<1x32xf32> to vector<1x32xbf16>
    %cst_13 = arith.constant dense<0.000000e+00> : vector<1x128xf32>
    %30 = tpu.matmul %29, %6, %cst_13 {dimension_numbers = #tpu.dot_dimension_numbers<[1], [0], [0], [1], [0, 0, 1, 1], [], []>} : vector<1x32xbf16>, vector<32x128xbf16>, vector<1x128xf32> -> vector<1x128xf32>
    %31 = vector.extract_strided_slice %5 {offsets = [1, 0], sizes = [1, 128], strides = [1, 1]} : vector<8x128xf32> to vector<1x128xf32>
    %32 = arith.addf %31, %30 : vector<1x128xf32>
    %33 = arith.negf %32 : vector<1x128xf32>
    %34 = math.exp %33 : vector<1x128xf32>
    %cst_14 = arith.constant 1.000000e+00 : f32
    %35 = vector.broadcast %cst_14 : f32 to vector<1x128xf32>
    %36 = arith.addf %35, %34 : vector<1x128xf32>
    %37 = arith.divf %35, %36 : vector<1x128xf32>
    %38 = math.tanh %32 : vector<1x128xf32>
    %39 = vector.extract_strided_slice %37 {offsets = [0, 0], sizes = [1, 32], strides = [1, 1]} : vector<1x128xf32> to vector<1x32xf32>
    %40 = vector.extract_strided_slice %37 {offsets = [0, 32], sizes = [1, 32], strides = [1, 1]} : vector<1x128xf32> to vector<1x32xf32>
    %41 = vector.extract_strided_slice %37 {offsets = [0, 96], sizes = [1, 32], strides = [1, 1]} : vector<1x128xf32> to vector<1x32xf32>
    %42 = vector.extract_strided_slice %38 {offsets = [0, 64], sizes = [1, 32], strides = [1, 1]} : vector<1x128xf32> to vector<1x32xf32>
    %43 = arith.mulf %40, %25 : vector<1x32xf32>
    %44 = arith.mulf %39, %42 : vector<1x32xf32>
    %45 = arith.addf %43, %44 : vector<1x32xf32>
    %46 = math.tanh %45 : vector<1x32xf32>
    %47 = arith.mulf %41, %46 : vector<1x32xf32>
    %c1 = arith.constant 1 : index
    %c0_15 = arith.constant 0 : index
    %48 = vector.load %arg4[%c1, %c0_15] : memref<8x32xf32, #tpu.memory_space<vmem>>, vector<1x32xf32>
    tpu.vector_store %arg4[%c1, %c0_15], %47 {strides = array<i32>} : memref<8x32xf32, #tpu.memory_space<vmem>>, vector<1x32xf32>,
    %49 = arith.truncf %47 : vector<1x32xf32> to vector<1x32xbf16>
    %cst_16 = arith.constant dense<0.000000e+00> : vector<1x128xf32>
    %50 = tpu.matmul %49, %6, %cst_16 {dimension_numbers = #tpu.dot_dimension_numbers<[1], [0], [0], [1], [0, 0, 1, 1], [], []>} : vector<1x32xbf16>, vector<32x128xbf16>, vector<1x128xf32> -> vector<1x128xf32>
    %51 = vector.extract_strided_slice %5 {offsets = [2, 0], sizes = [1, 128], strides = [1, 1]} : vector<8x128xf32> to vector<1x128xf32>
    %52 = arith.addf %51, %50 : vector<1x128xf32>
    %53 = arith.negf %52 : vector<1x128xf32>
    %54 = math.exp %53 : vector<1x128xf32>
    %cst_17 = arith.constant 1.000000e+00 : f32
    %55 = vector.broadcast %cst_17 : f32 to vector<1x128xf32>
    %56 = arith.addf %55, %54 : vector<1x128xf32>
    %57 = arith.divf %55, %56 : vector<1x128xf32>
    %58 = math.tanh %52 : vector<1x128xf32>
    %59 = vector.extract_strided_slice %57 {offsets = [0, 0], sizes = [1, 32], strides = [1, 1]} : vector<1x128xf32> to vector<1x32xf32>
    %60 = vector.extract_strided_slice %57 {offsets = [0, 32], sizes = [1, 32], strides = [1, 1]} : vector<1x128xf32> to vector<1x32xf32>
    %61 = vector.extract_strided_slice %57 {offsets = [0, 96], sizes = [1, 32], strides = [1, 1]} : vector<1x128xf32> to vector<1x32xf32>
    %62 = vector.extract_strided_slice %58 {offsets = [0, 64], sizes = [1, 32], strides = [1, 1]} : vector<1x128xf32> to vector<1x32xf32>
    %63 = arith.mulf %60, %45 : vector<1x32xf32>
    %64 = arith.mulf %59, %62 : vector<1x32xf32>
    %65 = arith.addf %63, %64 : vector<1x32xf32>
    %66 = math.tanh %65 : vector<1x32xf32>
    %67 = arith.mulf %61, %66 : vector<1x32xf32>
    %c2 = arith.constant 2 : index
    %c0_18 = arith.constant 0 : index
    %68 = vector.load %arg4[%c2, %c0_18] : memref<8x32xf32, #tpu.memory_space<vmem>>, vector<1x32xf32>
    tpu.vector_store %arg4[%c2, %c0_18], %67 {strides = array<i32>} : memref<8x32xf32, #tpu.memory_space<vmem>>, vector<1x32xf32>,
    %69 = arith.truncf %67 : vector<1x32xf32> to vector<1x32xbf16>
    %cst_19 = arith.constant dense<0.000000e+00> : vector<1x128xf32>
    %70 = tpu.matmul %69, %6, %cst_19 {dimension_numbers = #tpu.dot_dimension_numbers<[1], [0], [0], [1], [0, 0, 1, 1], [], []>} : vector<1x32xbf16>, vector<32x128xbf16>, vector<1x128xf32> -> vector<1x128xf32>
    %71 = vector.extract_strided_slice %5 {offsets = [3, 0], sizes = [1, 128], strides = [1, 1]} : vector<8x128xf32> to vector<1x128xf32>
    %72 = arith.addf %71, %70 : vector<1x128xf32>
    %73 = arith.negf %72 : vector<1x128xf32>
    %74 = math.exp %73 : vector<1x128xf32>
    %cst_20 = arith.constant 1.000000e+00 : f32
    %75 = vector.broadcast %cst_20 : f32 to vector<1x128xf32>
    %76 = arith.addf %75, %74 : vector<1x128xf32>
    %77 = arith.divf %75, %76 : vector<1x128xf32>
    %78 = math.tanh %72 : vector<1x128xf32>
    %79 = vector.extract_strided_slice %77 {offsets = [0, 0], sizes = [1, 32], strides = [1, 1]} : vector<1x128xf32> to vector<1x32xf32>
    %80 = vector.extract_strided_slice %77 {offsets = [0, 32], sizes = [1, 32], strides = [1, 1]} : vector<1x128xf32> to vector<1x32xf32>
    %81 = vector.extract_strided_slice %77 {offsets = [0, 96], sizes = [1, 32], strides = [1, 1]} : vector<1x128xf32> to vector<1x32xf32>
    %82 = vector.extract_strided_slice %78 {offsets = [0, 64], sizes = [1, 32], strides = [1, 1]} : vector<1x128xf32> to vector<1x32xf32>
    %83 = arith.mulf %80, %65 : vector<1x32xf32>
    %84 = arith.mulf %79, %82 : vector<1x32xf32>
    %85 = arith.addf %83, %84 : vector<1x32xf32>
    %86 = math.tanh %85 : vector<1x32xf32>
    %87 = arith.mulf %81, %86 : vector<1x32xf32>
    %c3 = arith.constant 3 : index
    %c0_21 = arith.constant 0 : index
    %88 = vector.load %arg4[%c3, %c0_21] : memref<8x32xf32, #tpu.memory_space<vmem>>, vector<1x32xf32>
    tpu.vector_store %arg4[%c3, %c0_21], %87 {strides = array<i32>} : memref<8x32xf32, #tpu.memory_space<vmem>>, vector<1x32xf32>,
    %89 = arith.truncf %87 : vector<1x32xf32> to vector<1x32xbf16>
    %cst_22 = arith.constant dense<0.000000e+00> : vector<1x128xf32>
    %90 = tpu.matmul %89, %6, %cst_22 {dimension_numbers = #tpu.dot_dimension_numbers<[1], [0], [0], [1], [0, 0, 1, 1], [], []>} : vector<1x32xbf16>, vector<32x128xbf16>, vector<1x128xf32> -> vector<1x128xf32>
    %91 = vector.extract_strided_slice %5 {offsets = [4, 0], sizes = [1, 128], strides = [1, 1]} : vector<8x128xf32> to vector<1x128xf32>
    %92 = arith.addf %91, %90 : vector<1x128xf32>
    %93 = arith.negf %92 : vector<1x128xf32>
    %94 = math.exp %93 : vector<1x128xf32>
    %cst_23 = arith.constant 1.000000e+00 : f32
    %95 = vector.broadcast %cst_23 : f32 to vector<1x128xf32>
    %96 = arith.addf %95, %94 : vector<1x128xf32>
    %97 = arith.divf %95, %96 : vector<1x128xf32>
    %98 = math.tanh %92 : vector<1x128xf32>
    %99 = vector.extract_strided_slice %97 {offsets = [0, 0], sizes = [1, 32], strides = [1, 1]} : vector<1x128xf32> to vector<1x32xf32>
    %100 = vector.extract_strided_slice %97 {offsets = [0, 32], sizes = [1, 32], strides = [1, 1]} : vector<1x128xf32> to vector<1x32xf32>
    %101 = vector.extract_strided_slice %97 {offsets = [0, 96], sizes = [1, 32], strides = [1, 1]} : vector<1x128xf32> to vector<1x32xf32>
    %102 = vector.extract_strided_slice %98 {offsets = [0, 64], sizes = [1, 32], strides = [1, 1]} : vector<1x128xf32> to vector<1x32xf32>
    %103 = arith.mulf %100, %85 : vector<1x32xf32>
    %104 = arith.mulf %99, %102 : vector<1x32xf32>
    %105 = arith.addf %103, %104 : vector<1x32xf32>
    %106 = math.tanh %105 : vector<1x32xf32>
    %107 = arith.mulf %101, %106 : vector<1x32xf32>
    %c4 = arith.constant 4 : index
    %c0_24 = arith.constant 0 : index
    %108 = vector.load %arg4[%c4, %c0_24] : memref<8x32xf32, #tpu.memory_space<vmem>>, vector<1x32xf32>
    tpu.vector_store %arg4[%c4, %c0_24], %107 {strides = array<i32>} : memref<8x32xf32, #tpu.memory_space<vmem>>, vector<1x32xf32>,
    %109 = arith.truncf %107 : vector<1x32xf32> to vector<1x32xbf16>
    %cst_25 = arith.constant dense<0.000000e+00> : vector<1x128xf32>
    %110 = tpu.matmul %109, %6, %cst_25 {dimension_numbers = #tpu.dot_dimension_numbers<[1], [0], [0], [1], [0, 0, 1, 1], [], []>} : vector<1x32xbf16>, vector<32x128xbf16>, vector<1x128xf32> -> vector<1x128xf32>
    %111 = vector.extract_strided_slice %5 {offsets = [5, 0], sizes = [1, 128], strides = [1, 1]} : vector<8x128xf32> to vector<1x128xf32>
    %112 = arith.addf %111, %110 : vector<1x128xf32>
    %113 = arith.negf %112 : vector<1x128xf32>
    %114 = math.exp %113 : vector<1x128xf32>
    %cst_26 = arith.constant 1.000000e+00 : f32
    %115 = vector.broadcast %cst_26 : f32 to vector<1x128xf32>
    %116 = arith.addf %115, %114 : vector<1x128xf32>
    %117 = arith.divf %115, %116 : vector<1x128xf32>
    %118 = math.tanh %112 : vector<1x128xf32>
    %119 = vector.extract_strided_slice %117 {offsets = [0, 0], sizes = [1, 32], strides = [1, 1]} : vector<1x128xf32> to vector<1x32xf32>
    %120 = vector.extract_strided_slice %117 {offsets = [0, 32], sizes = [1, 32], strides = [1, 1]} : vector<1x128xf32> to vector<1x32xf32>
    %121 = vector.extract_strided_slice %117 {offsets = [0, 96], sizes = [1, 32], strides = [1, 1]} : vector<1x128xf32> to vector<1x32xf32>
    %122 = vector.extract_strided_slice %118 {offsets = [0, 64], sizes = [1, 32], strides = [1, 1]} : vector<1x128xf32> to vector<1x32xf32>
    %123 = arith.mulf %120, %105 : vector<1x32xf32>
    %124 = arith.mulf %119, %122 : vector<1x32xf32>
    %125 = arith.addf %123, %124 : vector<1x32xf32>
    %126 = math.tanh %125 : vector<1x32xf32>
    %127 = arith.mulf %121, %126 : vector<1x32xf32>
    %c5 = arith.constant 5 : index
    %c0_27 = arith.constant 0 : index
    %128 = vector.load %arg4[%c5, %c0_27] : memref<8x32xf32, #tpu.memory_space<vmem>>, vector<1x32xf32>
    tpu.vector_store %arg4[%c5, %c0_27], %127 {strides = array<i32>} : memref<8x32xf32, #tpu.memory_space<vmem>>, vector<1x32xf32>,
    %129 = arith.truncf %127 : vector<1x32xf32> to vector<1x32xbf16>
    %cst_28 = arith.constant dense<0.000000e+00> : vector<1x128xf32>
    %130 = tpu.matmul %129, %6, %cst_28 {dimension_numbers = #tpu.dot_dimension_numbers<[1], [0], [0], [1], [0, 0, 1, 1], [], []>} : vector<1x32xbf16>, vector<32x128xbf16>, vector<1x128xf32> -> vector<1x128xf32>
    %131 = vector.extract_strided_slice %5 {offsets = [6, 0], sizes = [1, 128], strides = [1, 1]} : vector<8x128xf32> to vector<1x128xf32>
    %132 = arith.addf %131, %130 : vector<1x128xf32>
    %133 = arith.negf %132 : vector<1x128xf32>
    %134 = math.exp %133 : vector<1x128xf32>
    %cst_29 = arith.constant 1.000000e+00 : f32
    %135 = vector.broadcast %cst_29 : f32 to vector<1x128xf32>
    %136 = arith.addf %135, %134 : vector<1x128xf32>
    %137 = arith.divf %135, %136 : vector<1x128xf32>
    %138 = math.tanh %132 : vector<1x128xf32>
    %139 = vector.extract_strided_slice %137 {offsets = [0, 0], sizes = [1, 32], strides = [1, 1]} : vector<1x128xf32> to vector<1x32xf32>
    %140 = vector.extract_strided_slice %137 {offsets = [0, 32], sizes = [1, 32], strides = [1, 1]} : vector<1x128xf32> to vector<1x32xf32>
    %141 = vector.extract_strided_slice %137 {offsets = [0, 96], sizes = [1, 32], strides = [1, 1]} : vector<1x128xf32> to vector<1x32xf32>
    %142 = vector.extract_strided_slice %138 {offsets = [0, 64], sizes = [1, 32], strides = [1, 1]} : vector<1x128xf32> to vector<1x32xf32>
    %143 = arith.mulf %140, %125 : vector<1x32xf32>
    %144 = arith.mulf %139, %142 : vector<1x32xf32>
    %145 = arith.addf %143, %144 : vector<1x32xf32>
    %146 = math.tanh %145 : vector<1x32xf32>
    %147 = arith.mulf %141, %146 : vector<1x32xf32>
    %c6 = arith.constant 6 : index
    %c0_30 = arith.constant 0 : index
    %148 = vector.load %arg4[%c6, %c0_30] : memref<8x32xf32, #tpu.memory_space<vmem>>, vector<1x32xf32>
    tpu.vector_store %arg4[%c6, %c0_30], %147 {strides = array<i32>} : memref<8x32xf32, #tpu.memory_space<vmem>>, vector<1x32xf32>,
    %149 = arith.truncf %147 : vector<1x32xf32> to vector<1x32xbf16>
    %cst_31 = arith.constant dense<0.000000e+00> : vector<1x128xf32>
    %150 = tpu.matmul %149, %6, %cst_31 {dimension_numbers = #tpu.dot_dimension_numbers<[1], [0], [0], [1], [0, 0, 1, 1], [], []>} : vector<1x32xbf16>, vector<32x128xbf16>, vector<1x128xf32> -> vector<1x128xf32>
    %151 = vector.extract_strided_slice %5 {offsets = [7, 0], sizes = [1, 128], strides = [1, 1]} : vector<8x128xf32> to vector<1x128xf32>
    %152 = arith.addf %151, %150 : vector<1x128xf32>
    %153 = arith.negf %152 : vector<1x128xf32>
    %154 = math.exp %153 : vector<1x128xf32>
    %cst_32 = arith.constant 1.000000e+00 : f32
    %155 = vector.broadcast %cst_32 : f32 to vector<1x128xf32>
    %156 = arith.addf %155, %154 : vector<1x128xf32>
    %157 = arith.divf %155, %156 : vector<1x128xf32>
    %158 = math.tanh %152 : vector<1x128xf32>
    %159 = vector.extract_strided_slice %157 {offsets = [0, 0], sizes = [1, 32], strides = [1, 1]} : vector<1x128xf32> to vector<1x32xf32>
    %160 = vector.extract_strided_slice %157 {offsets = [0, 32], sizes = [1, 32], strides = [1, 1]} : vector<1x128xf32> to vector<1x32xf32>
    %161 = vector.extract_strided_slice %157 {offsets = [0, 96], sizes = [1, 32], strides = [1, 1]} : vector<1x128xf32> to vector<1x32xf32>
    %162 = vector.extract_strided_slice %158 {offsets = [0, 64], sizes = [1, 32], strides = [1, 1]} : vector<1x128xf32> to vector<1x32xf32>
    %163 = arith.mulf %160, %145 : vector<1x32xf32>
    %164 = arith.mulf %159, %162 : vector<1x32xf32>
    %165 = arith.addf %163, %164 : vector<1x32xf32>
    %166 = math.tanh %165 : vector<1x32xf32>
    %167 = arith.mulf %161, %166 : vector<1x32xf32>
    %c7 = arith.constant 7 : index
    %c0_33 = arith.constant 0 : index
    %168 = vector.load %arg4[%c7, %c0_33] : memref<8x32xf32, #tpu.memory_space<vmem>>, vector<1x32xf32>
    tpu.vector_store %arg4[%c7, %c0_33], %167 {strides = array<i32>} : memref<8x32xf32, #tpu.memory_space<vmem>>, vector<1x32xf32>,
    return
  }
}

</mosaic_0001>

<llo_original>
// kernel: encoder_forward.1
$region0: #{encoder_forward.1}
  #allocation0 [shape = 'u32[]', space=smem, size = 0x4, offset = 0x4, fixed_abs, tag = 'smem constant byte address 0x4 - core index']
  #allocation1 [shape = 'u32[144,128]{1,0:T(1,128)}', space=vmem, size = 0x12000, scoped, tag = 'internal scratch']
  %s0 = inlined_call_operand.vmem [shape: f32[8,128], index: 0, kind: input, shape index: {}]
  %s1 = inlined_call_operand.vmem [shape: f32[128,128], index: 1, kind: input, shape index: {}]
  %s2 = inlined_call_operand.vmem [shape: bf16[32,128], index: 2, kind: input, shape index: {}]
  %s3 = inlined_call_operand.vmem [shape: f32[1,128], index: 3, kind: input, shape index: {}]
  %s4 = inlined_call_operand.hbm [shape: f32[8,32], index: 4, kind: output, shape index: {}]
  %s5 = sld [smem:[#allocation0]]
  $region26: #{encoder_forward.1} parent=0
    _
  %s7 = ssub.s32 1, %s5
  %s8 = scalar_select 0, %s7, %s5
  $region1: #{encoder_forward.1} parent=0
    #allocation2 [shape = 'u8[4096]{0}', space=vmem, size = 0x1000, scoped, tag = 'output window, operand 0, single buffered']
    #allocation3 [shape = 's32[1]{0}', space=sflag, size = 0x4, scoped, tag = 'scoped memory for encoder_forward.1']
    %9 = vsyncpa [#allocation3], 0
    // Predicated region
    $region2: #{encoder_forward.1} parent=1 // pred_check
      _
    $region3: #{encoder_forward.1} parent=1 // pred_check_branch
      %11 = sbr.rel (0) target = $region5
    $region4: #{encoder_forward.1} parent=1 // pred_region
      _
    $region5: #{encoder_forward.1} parent=1 // pred_fallthru
      _
    // Predicated region
    $region6: #{encoder_forward.1} parent=1 // pred_check
      _
    $region7: #{encoder_forward.1} parent=1 // pred_check_branch
      %13 = sbr.rel (0) target = $region9
    $region8: #{encoder_forward.1} parent=1 // pred_region
      _
    $region9: #{encoder_forward.1} parent=1 // pred_fallthru
      _
    // Predicated region
    $region10: #{encoder_forward.1} parent=1 // pred_check
      _
    $region11: #{encoder_forward.1} parent=1 // pred_check_branch
      %15 = sbr.rel (0) target = $region13
    $region12: #{encoder_forward.1} parent=1 // pred_region
      _
    $region13: #{encoder_forward.1} parent=1 // pred_fallthru
      _
    // Predicated region
    $region14: #{encoder_forward.1} parent=1 // pred_check
      _
    $region15: #{encoder_forward.1} parent=1 // pred_check_branch
      %17 = sbr.rel (0) target = $region17
    $region16: #{encoder_forward.1} parent=1 // pred_region
      _
    $region17: #{encoder_forward.1} parent=1 // pred_fallthru
      _
    %v19 = vld [vmem:[%s0] sm:$0xff]
    %v20 = vld [vmem:[%s1] sm:$0xff]
    %v21 = vld [vmem:[%s1 + $0x8] sm:$0xff]
    %v22 = vld [vmem:[%s1 + $0x10] sm:$0xff]
    %v23 = vld [vmem:[%s1 + $0x18] sm:$0xff]
    %v24 = vld [vmem:[%s1 + $0x20] sm:$0xff]
    %v25 = vld [vmem:[%s1 + $0x28] sm:$0xff]
    %v26 = vld [vmem:[%s1 + $0x30] sm:$0xff]
    %v27 = vld [vmem:[%s1 + $0x38] sm:$0xff]
    %v28 = vld [vmem:[%s1 + $0x40] sm:$0xff]
    %v29 = vld [vmem:[%s1 + $0x48] sm:$0xff]
    %v30 = vld [vmem:[%s1 + $0x50] sm:$0xff]
    %v31 = vld [vmem:[%s1 + $0x58] sm:$0xff]
    %v32 = vld [vmem:[%s1 + $0x60] sm:$0xff]
    %v33 = vld [vmem:[%s1 + $0x68] sm:$0xff]
    %v34 = vld [vmem:[%s1 + $0x70] sm:$0xff]
    %v35 = vld [vmem:[%s1 + $0x78] sm:$0xff]
    %v36 = vld [vmem:[%s3] sm:$0x1]
    %v38 = vlaneseq
    %v39 = vshrl.u32 %v38, 7
    %v40 = vsub.s32 0, %v39
    %v41 = vrot.slane %v36, %v40
    %43 = vmatprep.subr.mxu0 0.0
    %44 = vmatpush1.msra.mxu0 %v20
    %45 = vmatprep.subr.mxu0 0.0
    %46 = vmatpush1.msra.mxu0 %v21
    %47 = vmatprep.subr.mxu0 0.0
    %48 = vmatpush1.msra.mxu0 %v22
    %49 = vmatprep.subr.mxu0 0.0
    %50 = vmatpush1.msra.mxu0 %v23
    %51 = vmatprep.subr.mxu0 0.0
    %52 = vmatpush1.msra.mxu0 %v24
    %53 = vmatprep.subr.mxu0 0.0
    %54 = vmatpush1.msra.mxu0 %v25
    %55 = vmatprep.subr.mxu0 0.0
    %56 = vmatpush1.msra.mxu0 %v26
    %57 = vmatprep.subr.mxu0 0.0
    %58 = vmatpush1.msra.mxu0 %v27
    %59 = vmatprep.subr.mxu0 0.0
    %60 = vmatpush1.msra.mxu0 %v28
    %61 = vmatprep.subr.mxu0 0.0
    %62 = vmatpush1.msra.mxu0 %v29
    %63 = vmatprep.subr.mxu0 0.0
    %64 = vmatpush1.msra.mxu0 %v30
    %65 = vmatprep.subr.mxu0 0.0
    %66 = vmatpush1.msra.mxu0 %v31
    %67 = vmatprep.subr.mxu0 0.0
    %68 = vmatpush1.msra.mxu0 %v32
    %69 = vmatprep.subr.mxu0 0.0
    %70 = vmatpush1.msra.mxu0 %v33
    %71 = vmatprep.subr.mxu0 0.0
    %72 = vmatpush1.msra.mxu0 %v34
    %73 = vmatprep.subr.mxu0 0.0
    %74 = vmatpush1.msra.mxu0 %v35
    %75 = vmatprep.subr.mxu0 0.0
    %76 = vmatpush1.msra.mxu0 0.0
    %77 = vmatprep.subr.mxu0 0.0
    %78 = vmatpush1.msra.mxu0 0.0
    %79 = vmatprep.subr.mxu0 0.0
    %80 = vmatpush1.msra.mxu0 0.0
    %81 = vmatprep.subr.mxu0 0.0
    %82 = vmatpush1.msra.mxu0 0.0
    %83 = vmatprep.subr.mxu0 0.0
    %84 = vmatpush1.msra.mxu0 0.0
    %85 = vmatprep.subr.mxu0 0.0
    %86 = vmatpush1.msra.mxu0 0.0
    %87 = vmatprep.subr.mxu0 0.0
    %88 = vmatpush1.msra.mxu0 0.0
    %89 = vmatprep.subr.mxu0 0.0
    %90 = vmatpush1.msra.mxu0 0.0
    %91 = vmatprep.subr.mxu0 0.0
    %92 = vmatpush1.msra.mxu0 0.0
    %93 = vmatprep.subr.mxu0 0.0
    %94 = vmatpush1.msra.mxu0 0.0
    %95 = vmatprep.subr.mxu0 0.0
    %96 = vmatpush1.msra.mxu0 0.0
    %97 = vmatprep.subr.mxu0 0.0
    %98 = vmatpush1.msra.mxu0 0.0
    %99 = vmatprep.subr.mxu0 0.0
    %100 = vmatpush1.msra.mxu0 0.0
    %101 = vmatprep.subr.mxu0 0.0
    %102 = vmatpush1.msra.mxu0 0.0
    %103 = vmatprep.subr.mxu0 0.0
    %104 = vmatpush1.msra.mxu0 0.0
    %105 = vmatprep.subr.mxu0 0.0
    %106 = vmatpush1.msra.mxu0 0.0
    %107 = vmatprep.mubr.f32.mxu0 0.0
    %108 = vmatmul.mubr.f32.gmra.mrb[0].mxu0 %v19
    %v109 = vpop.f32.mrb[0].mxu0
    %v110 = vadd.f32 %v41, %v109
    %v111 = vpop.f32.mrb[0].mxu0
    %112 = vdwg.mxu0
    %v113 = vld [vmem:[%s2] sm:$0xf]
    %v114 = vld [vmem:[%s2 + $0x4] sm:$0xf]
    %v115 = vld [vmem:[%s2 + $0x8] sm:$0xf]
    %v116 = vld [vmem:[%s2 + $0xc] sm:$0xf]
    %v121 = vunpack.c.l.b16 %v113
    %v122 = vunpack.c.l.b16 %v114
    %v123 = vunpack.c.l.b16 %v115
    %v124 = vunpack.c.l.b16 %v116
    %v125 = vpack.c.b16 %v122, %v121
    %v126 = vpack.c.b16 %v124, %v123
    %vm129 = vcmask 261120
    %v131 = vsel %vm129, 0, 0
    %133 = vmatprep.subr.bf16.mxu0 0
    %134 = vmatpush1.bf16.msra.mxu0 %v125
    %135 = vmatprep.subr.bf16.mxu0 0
    %136 = vmatpush1.bf16.msra.mxu0 %v126
    %137 = vmatprep.subr.bf16.mxu0 0
    %138 = vmatpush1.bf16.msra.mxu0 0
    %139 = vmatprep.subr.bf16.mxu0 0
    %140 = vmatpush1.bf16.msra.mxu0 0
    %141 = vmatprep.subr.bf16.mxu0 0
    %142 = vmatpush1.bf16.msra.mxu0 0
    %143 = vmatprep.subr.bf16.mxu0 0
    %144 = vmatpush1.bf16.msra.mxu0 0
    %145 = vmatprep.subr.bf16.mxu0 0
    %146 = vmatpush1.bf16.msra.mxu0 0
    %147 = vmatprep.subr.bf16.mxu0 0
    %148 = vmatpush1.bf16.msra.mxu0 0
    %149 = vmatprep.subr.bf16.mxu0 0
    %150 = vmatpush1.bf16.msra.mxu0 0
    %151 = vmatprep.subr.bf16.mxu0 0
    %152 = vmatpush1.bf16.msra.mxu0 0
    %153 = vmatprep.subr.bf16.mxu0 0
    %154 = vmatpush1.bf16.msra.mxu0 0
    %155 = vmatprep.subr.bf16.mxu0 0
    %156 = vmatpush1.bf16.msra.mxu0 0
    %157 = vmatprep.subr.bf16.mxu0 0
    %158 = vmatpush1.bf16.msra.mxu0 0
    %159 = vmatprep.subr.bf16.mxu0 0
    %160 = vmatpush1.bf16.msra.mxu0 0
    %161 = vmatprep.subr.bf16.mxu0 0
    %162 = vmatpush1.bf16.msra.mxu0 0
    %163 = vmatprep.subr.bf16.mxu0 0
    %164 = vmatpush1.bf16.msra.mxu0 0
    %165 = vmatprep.mubr.bf16.mxu0 0
    %166 = vmatmul.mubr.bf16.gmra.mrb[0].mxu0 %v131
    %v167 = vpop.f32.mrb[0].mxu0
    %v168 = vadd.f32 0.0, %v167
    %v169 = vpop.f32.mrb[0].mxu0
    %v170 = vpop.f32.mrb[0].mxu0
    %v171 = vpop.f32.mrb[0].mxu0
    %172 = vdwg.mxu0
    %v173 = vadd.f32 %v110, %v168
    %v174 = vxor.u32 %v173, 2147483648
    %v175 = vmul.f32 %v174, 1.442695
    %v176 = vpow.pop %v175
    %v177 = vadd.f32 %v176, 1.0
    %v178 = vrcp.pop %v177
    %v179 = vmul.f32 1.0, %v178
    %v180 = vtanh.pop %v173
    %v181 = vmul.f32 %v179, 0.0
    %183 = vrot.lane.b32.xlu0 %v180, 64
    %v184 = vpop.permute.xlu0 %183
    %v186 = vmul.f32 %v179, %v184
    %188 = vrot.lane.b32.xlu0 %v186, 32
    %v189 = vpop.permute.xlu0 %188
    %v191 = vadd.f32 %v181, %v189
    %v192 = vtanh.pop %v191
    %194 = vrot.lane.b32.xlu0 %v192, 64
    %v195 = vpop.permute.xlu0 %194
    %v197 = vmul.f32 %v179, %v195
    %199 = vrot.lane.b32.xlu0 %v197, 32
    %v200 = vpop.permute.xlu0 %199
    %vm202 = vcmask 253952
    %203 = vst.msk [vmem:[#allocation2] sm:$0x1] %vm202, %v200
    %v204 = vpack.c.bf16 %v197, %v197
    %206 = vrot.lane.b32.xlu0 %v204, 32
    %v207 = vpop.permute.xlu0 %206
    %v209 = vsel %vm129, %v207, 0
    %211 = vmatprep.subr.bf16.mxu0 0
    %212 = vmatpush1.bf16.msra.mxu0 %v125
    %213 = vmatprep.subr.bf16.mxu0 0
    %214 = vmatpush1.bf16.msra.mxu0 %v126
    %215 = vmatprep.subr.bf16.mxu0 0
    %216 = vmatpush1.bf16.msra.mxu0 0
    %217 = vmatprep.subr.bf16.mxu0 0
    %218 = vmatpush1.bf16.msra.mxu0 0
    %219 = vmatprep.subr.bf16.mxu0 0
    %220 = vmatpush1.bf16.msra.mxu0 0
    %221 = vmatprep.subr.bf16.mxu0 0
    %222 = vmatpush1.bf16.msra.mxu0 0
    %223 = vmatprep.subr.bf16.mxu0 0
    %224 = vmatpush1.bf16.msra.mxu0 0
    %225 = vmatprep.subr.bf16.mxu0 0
    %226 = vmatpush1.bf16.msra.mxu0 0
    %227 = vmatprep.subr.bf16.mxu0 0
    %228 = vmatpush1.bf16.msra.mxu0 0
    %229 = vmatprep.subr.bf16.mxu0 0
    %230 = vmatpush1.bf16.msra.mxu0 0
    %231 = vmatprep.subr.bf16.mxu0 0
    %232 = vmatpush1.bf16.msra.mxu0 0
    %233 = vmatprep.subr.bf16.mxu0 0
    %234 = vmatpush1.bf16.msra.mxu0 0
    %235 = vmatprep.subr.bf16.mxu0 0
    %236 = vmatpush1.bf16.msra.mxu0 0
    %237 = vmatprep.subr.bf16.mxu0 0
    %238 = vmatpush1.bf16.msra.mxu0 0
    %239 = vmatprep.subr.bf16.mxu0 0
    %240 = vmatpush1.bf16.msra.mxu0 0
    %241 = vmatprep.subr.bf16.mxu0 0
    %242 = vmatpush1.bf16.msra.mxu0 0
    %243 = vmatprep.mubr.bf16.mxu0 0
    %244 = vmatmul.mubr.bf16.gmra.mrb[0].mxu0 %v209
    %v245 = vpop.f32.mrb[0].mxu0
    %v246 = vadd.f32 0.0, %v245
    %v247 = vpop.f32.mrb[0].mxu0
    %v248 = vpop.f32.mrb[0].mxu0
    %v249 = vpop.f32.mrb[0].mxu0
    %250 = vdwg.mxu0
    %v252 = vrot.slane %v246, 7
    %v254 = vadd.f32 %v110, %v252
    %v255 = vxor.u32 %v254, 2147483648
    %v256 = vmul.f32 %v255, 1.442695
    %v257 = vpow.pop %v256
    %v258 = vadd.f32 %v257, 1.0
    %v259 = vrcp.pop %v258
    %v260 = vmul.f32 1.0, %v259
    %v261 = vtanh.pop %v254
    %v263 = vrot.slane %v191, 7
    %v265 = vmul.f32 %v260, %v263
    %267 = vrot.lane.b32.xlu0 %v261, 64
    %v268 = vpop.permute.xlu0 %267
    %v270 = vmul.f32 %v260, %v268
    %272 = vrot.lane.b32.xlu0 %v270, 32
    %v273 = vpop.permute.xlu0 %272
    %v275 = vadd.f32 %v265, %v273
    %v276 = vtanh.pop %v275
    %278 = vrot.lane.b32.xlu0 %v276, 64
    %v279 = vpop.permute.xlu0 %278
    %v281 = vmul.f32 %v260, %v279
    %283 = vrot.lane.b32.xlu0 %v281, 32
    %v284 = vpop.permute.xlu0 %283
    %vm286 = vcmask 254977
    %287 = vst.msk [vmem:[#allocation2] sm:$0x2] %vm286, %v284
    %v288 = vpack.c.bf16 %v281, %v281
    %v290 = vshrl.u32 %v288, 16
    %292 = vrot.lane.b32.xlu0 %v290, 32
    %v293 = vpop.permute.xlu0 %292
    %v295 = vsel %vm129, %v293, 0
    %297 = vmatprep.subr.bf16.mxu0 0
    %298 = vmatpush1.bf16.msra.mxu0 %v125
    %299 = vmatprep.subr.bf16.mxu0 0
    %300 = vmatpush1.bf16.msra.mxu0 %v126
    %301 = vmatprep.subr.bf16.mxu0 0
    %302 = vmatpush1.bf16.msra.mxu0 0
    %303 = vmatprep.subr.bf16.mxu0 0
    %304 = vmatpush1.bf16.msra.mxu0 0
    %305 = vmatprep.subr.bf16.mxu0 0
    %306 = vmatpush1.bf16.msra.mxu0 0
    %307 = vmatprep.subr.bf16.mxu0 0
    %308 = vmatpush1.bf16.msra.mxu0 0
    %309 = vmatprep.subr.bf16.mxu0 0
    %310 = vmatpush1.bf16.msra.mxu0 0
    %311 = vmatprep.subr.bf16.mxu0 0
    %312 = vmatpush1.bf16.msra.mxu0 0
    %313 = vmatprep.subr.bf16.mxu0 0
    %314 = vmatpush1.bf16.msra.mxu0 0
    %315 = vmatprep.subr.bf16.mxu0 0
    %316 = vmatpush1.bf16.msra.mxu0 0
    %317 = vmatprep.subr.bf16.mxu0 0
    %318 = vmatpush1.bf16.msra.mxu0 0
    %319 = vmatprep.subr.bf16.mxu0 0
    %320 = vmatpush1.bf16.msra.mxu0 0
    %321 = vmatprep.subr.bf16.mxu0 0
    %322 = vmatpush1.bf16.msra.mxu0 0
    %323 = vmatprep.subr.bf16.mxu0 0
    %324 = vmatpush1.bf16.msra.mxu0 0
    %325 = vmatprep.subr.bf16.mxu0 0
    %326 = vmatpush1.bf16.msra.mxu0 0
    %327 = vmatprep.subr.bf16.mxu0 0
    %328 = vmatpush1.bf16.msra.mxu0 0
    %329 = vmatprep.mubr.bf16.mxu0 0
    %330 = vmatmul.mubr.bf16.gmra.mrb[0].mxu0 %v295
    %v331 = vpop.f32.mrb[0].mxu0
    %v332 = vadd.f32 0.0, %v331
    %v333 = vpop.f32.mrb[0].mxu0
    %v334 = vpop.f32.mrb[0].mxu0
    %v335 = vpop.f32.mrb[0].mxu0
    %336 = vdwg.mxu0
    %v338 = vrot.slane %v332, 6
    %v340 = vadd.f32 %v110, %v338
    %v341 = vxor.u32 %v340, 2147483648
    %v342 = vmul.f32 %v341, 1.442695
    %v343 = vpow.pop %v342
    %v344 = vadd.f32 %v343, 1.0
    %v345 = vrcp.pop %v344
    %v346 = vmul.f32 1.0, %v345
    %v347 = vtanh.pop %v340
    %v349 = vrot.slane %v275, 7
    %v351 = vmul.f32 %v346, %v349
    %353 = vrot.lane.b32.xlu0 %v347, 64
    %v354 = vpop.permute.xlu0 %353
    %v356 = vmul.f32 %v346, %v354
    %358 = vrot.lane.b32.xlu0 %v356, 32
    %v359 = vpop.permute.xlu0 %358
    %v361 = vadd.f32 %v351, %v359
    %v362 = vtanh.pop %v361
    %364 = vrot.lane.b32.xlu0 %v362, 64
    %v365 = vpop.permute.xlu0 %364
    %v367 = vmul.f32 %v346, %v365
    %369 = vrot.lane.b32.xlu0 %v367, 32
    %v370 = vpop.permute.xlu0 %369
    %vm372 = vcmask 256002
    %373 = vst.msk [vmem:[#allocation2] sm:$0x4] %vm372, %v370
    %v374 = vpack.c.bf16 %v367, %v367
    %v376 = vrot.slane %v374, 1
    %377 = vrot.lane.b32.xlu0 %v376, 32
    %v378 = vpop.permute.xlu0 %377
    %v380 = vsel %vm129, %v378, 0
    %382 = vmatprep.subr.bf16.mxu0 0
    %383 = vmatpush1.bf16.msra.mxu0 %v125
    %384 = vmatprep.subr.bf16.mxu0 0
    %385 = vmatpush1.bf16.msra.mxu0 %v126
    %386 = vmatprep.subr.bf16.mxu0 0
    %387 = vmatpush1.bf16.msra.mxu0 0
    %388 = vmatprep.subr.bf16.mxu0 0
    %389 = vmatpush1.bf16.msra.mxu0 0
    %390 = vmatprep.subr.bf16.mxu0 0
    %391 = vmatpush1.bf16.msra.mxu0 0
    %392 = vmatprep.subr.bf16.mxu0 0
    %393 = vmatpush1.bf16.msra.mxu0 0
    %394 = vmatprep.subr.bf16.mxu0 0
    %395 = vmatpush1.bf16.msra.mxu0 0
    %396 = vmatprep.subr.bf16.mxu0 0
    %397 = vmatpush1.bf16.msra.mxu0 0
    %398 = vmatprep.subr.bf16.mxu0 0
    %399 = vmatpush1.bf16.msra.mxu0 0
    %400 = vmatprep.subr.bf16.mxu0 0
    %401 = vmatpush1.bf16.msra.mxu0 0
    %402 = vmatprep.subr.bf16.mxu0 0
    %403 = vmatpush1.bf16.msra.mxu0 0
    %404 = vmatprep.subr.bf16.mxu0 0
    %405 = vmatpush1.bf16.msra.mxu0 0
    %406 = vmatprep.subr.bf16.mxu0 0
    %407 = vmatpush1.bf16.msra.mxu0 0
    %408 = vmatprep.subr.bf16.mxu0 0
    %409 = vmatpush1.bf16.msra.mxu0 0
    %410 = vmatprep.subr.bf16.mxu0 0
    %411 = vmatpush1.bf16.msra.mxu0 0
    %412 = vmatprep.subr.bf16.mxu0 0
    %413 = vmatpush1.bf16.msra.mxu0 0
    %414 = vmatprep.mubr.bf16.mxu0 0
    %415 = vmatmul.mubr.bf16.gmra.mrb[0].mxu0 %v380
    %v416 = vpop.f32.mrb[0].mxu0
    %v417 = vadd.f32 0.0, %v416
    %v418 = vpop.f32.mrb[0].mxu0
    %v419 = vpop.f32.mrb[0].mxu0
    %v420 = vpop.f32.mrb[0].mxu0
    %421 = vdwg.mxu0
    %v423 = vrot.slane %v417, 5
    %v425 = vadd.f32 %v110, %v423
    %v426 = vxor.u32 %v425, 2147483648
    %v427 = vmul.f32 %v426, 1.442695
    %v428 = vpow.pop %v427
    %v429 = vadd.f32 %v428, 1.0
    %v430 = vrcp.pop %v429
    %v431 = vmul.f32 1.0, %v430
    %v432 = vtanh.pop %v425
    %v434 = vrot.slane %v361, 7
    %v436 = vmul.f32 %v431, %v434
    %438 = vrot.lane.b32.xlu0 %v432, 64
    %v439 = vpop.permute.xlu0 %438
    %v441 = vmul.f32 %v431, %v439
    %443 = vrot.lane.b32.xlu0 %v441, 32
    %v444 = vpop.permute.xlu0 %443
    %v446 = vadd.f32 %v436, %v444
    %v447 = vtanh.pop %v446
    %449 = vrot.lane.b32.xlu0 %v447, 64
    %v450 = vpop.permute.xlu0 %449
    %v452 = vmul.f32 %v431, %v450
    %454 = vrot.lane.b32.xlu0 %v452, 32
    %v455 = vpop.permute.xlu0 %454
    %vm457 = vcmask 257027
    %458 = vst.msk [vmem:[#allocation2] sm:$0x8] %vm457, %v455
    %v459 = vpack.c.bf16 %v452, %v452
    %v461 = vshrl.u32 %v459, 16
    %v463 = vrot.slane %v461, 1
    %464 = vrot.lane.b32.xlu0 %v463, 32
    %v465 = vpop.permute.xlu0 %464
    %v467 = vsel %vm129, %v465, 0
    %469 = vmatprep.subr.bf16.mxu0 0
    %470 = vmatpush1.bf16.msra.mxu0 %v125
    %471 = vmatprep.subr.bf16.mxu0 0
    %472 = vmatpush1.bf16.msra.mxu0 %v126
    %473 = vmatprep.subr.bf16.mxu0 0
    %474 = vmatpush1.bf16.msra.mxu0 0
    %475 = vmatprep.subr.bf16.mxu0 0
    %476 = vmatpush1.bf16.msra.mxu0 0
    %477 = vmatprep.subr.bf16.mxu0 0
    %478 = vmatpush1.bf16.msra.mxu0 0
    %479 = vmatprep.subr.bf16.mxu0 0
    %480 = vmatpush1.bf16.msra.mxu0 0
    %481 = vmatprep.subr.bf16.mxu0 0
    %482 = vmatpush1.bf16.msra.mxu0 0
    %483 = vmatprep.subr.bf16.mxu0 0
    %484 = vmatpush1.bf16.msra.mxu0 0
    %485 = vmatprep.subr.bf16.mxu0 0
    %486 = vmatpush1.bf16.msra.mxu0 0
    %487 = vmatprep.subr.bf16.mxu0 0
    %488 = vmatpush1.bf16.msra.mxu0 0
    %489 = vmatprep.subr.bf16.mxu0 0
    %490 = vmatpush1.bf16.msra.mxu0 0
    %491 = vmatprep.subr.bf16.mxu0 0
    %492 = vmatpush1.bf16.msra.mxu0 0
    %493 = vmatprep.subr.bf16.mxu0 0
    %494 = vmatpush1.bf16.msra.mxu0 0
    %495 = vmatprep.subr.bf16.mxu0 0
    %496 = vmatpush1.bf16.msra.mxu0 0
    %497 = vmatprep.subr.bf16.mxu0 0
    %498 = vmatpush1.bf16.msra.mxu0 0
    %499 = vmatprep.subr.bf16.mxu0 0
    %500 = vmatpush1.bf16.msra.mxu0 0
    %501 = vmatprep.mubr.bf16.mxu0 0
    %502 = vmatmul.mubr.bf16.gmra.mrb[0].mxu0 %v467
    %v503 = vpop.f32.mrb[0].mxu0
    %v504 = vadd.f32 0.0, %v503
    %v505 = vpop.f32.mrb[0].mxu0
    %v506 = vpop.f32.mrb[0].mxu0
    %v507 = vpop.f32.mrb[0].mxu0
    %508 = vdwg.mxu0
    %v510 = vrot.slane %v504, 4
    %v512 = vadd.f32 %v110, %v510
    %v513 = vxor.u32 %v512, 2147483648
    %v514 = vmul.f32 %v513, 1.442695
    %v515 = vpow.pop %v514
    %v516 = vadd.f32 %v515, 1.0
    %v517 = vrcp.pop %v516
    %v518 = vmul.f32 1.0, %v517
    %v519 = vtanh.pop %v512
    %v521 = vrot.slane %v446, 7
    %v523 = vmul.f32 %v518, %v521
    %525 = vrot.lane.b32.xlu0 %v519, 64
    %v526 = vpop.permute.xlu0 %525
    %v528 = vmul.f32 %v518, %v526
    %530 = vrot.lane.b32.xlu0 %v528, 32
    %v531 = vpop.permute.xlu0 %530
    %v533 = vadd.f32 %v523, %v531
    %v534 = vtanh.pop %v533
    %536 = vrot.lane.b32.xlu0 %v534, 64
    %v537 = vpop.permute.xlu0 %536
    %v539 = vmul.f32 %v518, %v537
    %541 = vrot.lane.b32.xlu0 %v539, 32
    %v542 = vpop.permute.xlu0 %541
    %vm544 = vcmask 258052
    %545 = vst.msk [vmem:[#allocation2] sm:$0x10] %vm544, %v542
    %v546 = vpack.c.bf16 %v539, %v539
    %v548 = vrot.slane %v546, 2
    %549 = vrot.lane.b32.xlu0 %v548, 32
    %v550 = vpop.permute.xlu0 %549
    %v552 = vsel %vm129, %v550, 0
    %554 = vmatprep.subr.bf16.mxu0 0
    %555 = vmatpush1.bf16.msra.mxu0 %v125
    %556 = vmatprep.subr.bf16.mxu0 0
    %557 = vmatpush1.bf16.msra.mxu0 %v126
    %558 = vmatprep.subr.bf16.mxu0 0
    %559 = vmatpush1.bf16.msra.mxu0 0
    %560 = vmatprep.subr.bf16.mxu0 0
    %561 = vmatpush1.bf16.msra.mxu0 0
    %562 = vmatprep.subr.bf16.mxu0 0
    %563 = vmatpush1.bf16.msra.mxu0 0
    %564 = vmatprep.subr.bf16.mxu0 0
    %565 = vmatpush1.bf16.msra.mxu0 0
    %566 = vmatprep.subr.bf16.mxu0 0
    %567 = vmatpush1.bf16.msra.mxu0 0
    %568 = vmatprep.subr.bf16.mxu0 0
    %569 = vmatpush1.bf16.msra.mxu0 0
    %570 = vmatprep.subr.bf16.mxu0 0
    %571 = vmatpush1.bf16.msra.mxu0 0
    %572 = vmatprep.subr.bf16.mxu0 0
    %573 = vmatpush1.bf16.msra.mxu0 0
    %574 = vmatprep.subr.bf16.mxu0 0
    %575 = vmatpush1.bf16.msra.mxu0 0
    %576 = vmatprep.subr.bf16.mxu0 0
    %577 = vmatpush1.bf16.msra.mxu0 0
    %578 = vmatprep.subr.bf16.mxu0 0
    %579 = vmatpush1.bf16.msra.mxu0 0
    %580 = vmatprep.subr.bf16.mxu0 0
    %581 = vmatpush1.bf16.msra.mxu0 0
    %582 = vmatprep.subr.bf16.mxu0 0
    %583 = vmatpush1.bf16.msra.mxu0 0
    %584 = vmatprep.subr.bf16.mxu0 0
    %585 = vmatpush1.bf16.msra.mxu0 0
    %586 = vmatprep.mubr.bf16.mxu0 0
    %587 = vmatmul.mubr.bf16.gmra.mrb[0].mxu0 %v552
    %v588 = vpop.f32.mrb[0].mxu0
    %v589 = vadd.f32 0.0, %v588
    %v590 = vpop.f32.mrb[0].mxu0
    %v591 = vpop.f32.mrb[0].mxu0
    %v592 = vpop.f32.mrb[0].mxu0
    %593 = vdwg.mxu0
    %v595 = vrot.slane %v589, 3
    %v597 = vadd.f32 %v110, %v595
    %v598 = vxor.u32 %v597, 2147483648
    %v599 = vmul.f32 %v598, 1.442695
    %v600 = vpow.pop %v599
    %v601 = vadd.f32 %v600, 1.0
    %v602 = vrcp.pop %v601
    %v603 = vmul.f32 1.0, %v602
    %v604 = vtanh.pop %v597
    %v606 = vrot.slane %v533, 7
    %v608 = vmul.f32 %v603, %v606
    %610 = vrot.lane.b32.xlu0 %v604, 64
    %v611 = vpop.permute.xlu0 %610
    %v613 = vmul.f32 %v603, %v611
    %615 = vrot.lane.b32.xlu0 %v613, 32
    %v616 = vpop.permute.xlu0 %615
    %v618 = vadd.f32 %v608, %v616
    %v619 = vtanh.pop %v618
    %621 = vrot.lane.b32.xlu0 %v619, 64
    %v622 = vpop.permute.xlu0 %621
    %v624 = vmul.f32 %v603, %v622
    %626 = vrot.lane.b32.xlu0 %v624, 32
    %v627 = vpop.permute.xlu0 %626
    %vm629 = vcmask 259077
    %630 = vst.msk [vmem:[#allocation2] sm:$0x20] %vm629, %v627
    %v631 = vpack.c.bf16 %v624, %v624
    %v633 = vshrl.u32 %v631, 16
    %v635 = vrot.slane %v633, 2
    %636 = vrot.lane.b32.xlu0 %v635, 32
    %v637 = vpop.permute.xlu0 %636
    %v639 = vsel %vm129, %v637, 0
    %641 = vmatprep.subr.bf16.mxu0 0
    %642 = vmatpush1.bf16.msra.mxu0 %v125
    %643 = vmatprep.subr.bf16.mxu0 0
    %644 = vmatpush1.bf16.msra.mxu0 %v126
    %645 = vmatprep.subr.bf16.mxu0 0
    %646 = vmatpush1.bf16.msra.mxu0 0
    %647 = vmatprep.subr.bf16.mxu0 0
    %648 = vmatpush1.bf16.msra.mxu0 0
    %649 = vmatprep.subr.bf16.mxu0 0
    %650 = vmatpush1.bf16.msra.mxu0 0
    %651 = vmatprep.subr.bf16.mxu0 0
    %652 = vmatpush1.bf16.msra.mxu0 0
    %653 = vmatprep.subr.bf16.mxu0 0
    %654 = vmatpush1.bf16.msra.mxu0 0
    %655 = vmatprep.subr.bf16.mxu0 0
    %656 = vmatpush1.bf16.msra.mxu0 0
    %657 = vmatprep.subr.bf16.mxu0 0
    %658 = vmatpush1.bf16.msra.mxu0 0
    %659 = vmatprep.subr.bf16.mxu0 0
    %660 = vmatpush1.bf16.msra.mxu0 0
    %661 = vmatprep.subr.bf16.mxu0 0
    %662 = vmatpush1.bf16.msra.mxu0 0
    %663 = vmatprep.subr.bf16.mxu0 0
    %664 = vmatpush1.bf16.msra.mxu0 0
    %665 = vmatprep.subr.bf16.mxu0 0
    %666 = vmatpush1.bf16.msra.mxu0 0
    %667 = vmatprep.subr.bf16.mxu0 0
    %668 = vmatpush1.bf16.msra.mxu0 0
    %669 = vmatprep.subr.bf16.mxu0 0
    %670 = vmatpush1.bf16.msra.mxu0 0
    %671 = vmatprep.subr.bf16.mxu0 0
    %672 = vmatpush1.bf16.msra.mxu0 0
    %673 = vmatprep.mubr.bf16.mxu0 0
    %674 = vmatmul.mubr.bf16.gmra.mrb[0].mxu0 %v639
    %v675 = vpop.f32.mrb[0].mxu0
    %v676 = vadd.f32 0.0, %v675
    %v677 = vpop.f32.mrb[0].mxu0
    %v678 = vpop.f32.mrb[0].mxu0
    %v679 = vpop.f32.mrb[0].mxu0
    %680 = vdwg.mxu0
    %v682 = vrot.slane %v676, 2
    %v684 = vadd.f32 %v110, %v682
    %v685 = vxor.u32 %v684, 2147483648
    %v686 = vmul.f32 %v685, 1.442695
    %v687 = vpow.pop %v686
    %v688 = vadd.f32 %v687, 1.0
    %v689 = vrcp.pop %v688
    %v690 = vmul.f32 1.0, %v689
    %v691 = vtanh.pop %v684
    %v693 = vrot.slane %v618, 7
    %v695 = vmul.f32 %v690, %v693
    %697 = vrot.lane.b32.xlu0 %v691, 64
    %v698 = vpop.permute.xlu0 %697
    %v700 = vmul.f32 %v690, %v698
    %702 = vrot.lane.b32.xlu0 %v700, 32
    %v703 = vpop.permute.xlu0 %702
    %v705 = vadd.f32 %v695, %v703
    %v706 = vtanh.pop %v705
    %708 = vrot.lane.b32.xlu0 %v706, 64
    %v709 = vpop.permute.xlu0 %708
    %v711 = vmul.f32 %v690, %v709
    %713 = vrot.lane.b32.xlu0 %v711, 32
    %v714 = vpop.permute.xlu0 %713
    %vm716 = vcmask 260102
    %717 = vst.msk [vmem:[#allocation2] sm:$0x40] %vm716, %v714
    %v718 = vpack.c.bf16 %v711, %v711
    %v720 = vrot.slane %v718, 3
    %721 = vrot.lane.b32.xlu0 %v720, 32
    %v722 = vpop.permute.xlu0 %721
    %v724 = vsel %vm129, %v722, 0
    %726 = vmatprep.subr.bf16.mxu0 0
    %727 = vmatpush1.bf16.msra.mxu0 %v125
    %728 = vmatprep.subr.bf16.mxu0 0
    %729 = vmatpush1.bf16.msra.mxu0 %v126
    %730 = vmatprep.subr.bf16.mxu0 0
    %731 = vmatpush1.bf16.msra.mxu0 0
    %732 = vmatprep.subr.bf16.mxu0 0
    %733 = vmatpush1.bf16.msra.mxu0 0
    %734 = vmatprep.subr.bf16.mxu0 0
    %735 = vmatpush1.bf16.msra.mxu0 0
    %736 = vmatprep.subr.bf16.mxu0 0
    %737 = vmatpush1.bf16.msra.mxu0 0
    %738 = vmatprep.subr.bf16.mxu0 0
    %739 = vmatpush1.bf16.msra.mxu0 0
    %740 = vmatprep.subr.bf16.mxu0 0
    %741 = vmatpush1.bf16.msra.mxu0 0
    %742 = vmatprep.subr.bf16.mxu0 0
    %743 = vmatpush1.bf16.msra.mxu0 0
    %744 = vmatprep.subr.bf16.mxu0 0
    %745 = vmatpush1.bf16.msra.mxu0 0
    %746 = vmatprep.subr.bf16.mxu0 0
    %747 = vmatpush1.bf16.msra.mxu0 0
    %748 = vmatprep.subr.bf16.mxu0 0
    %749 = vmatpush1.bf16.msra.mxu0 0
    %750 = vmatprep.subr.bf16.mxu0 0
    %751 = vmatpush1.bf16.msra.mxu0 0
    %752 = vmatprep.subr.bf16.mxu0 0
    %753 = vmatpush1.bf16.msra.mxu0 0
    %754 = vmatprep.subr.bf16.mxu0 0
    %755 = vmatpush1.bf16.msra.mxu0 0
    %756 = vmatprep.subr.bf16.mxu0 0
    %757 = vmatpush1.bf16.msra.mxu0 0
    %758 = vmatprep.mubr.bf16.mxu0 0
    %759 = vmatmul.mubr.bf16.gmra.mrb[0].mxu0 %v724
    %v760 = vpop.f32.mrb[0].mxu0
    %v761 = vadd.f32 0.0, %v760
    %v762 = vpop.f32.mrb[0].mxu0
    %v763 = vpop.f32.mrb[0].mxu0
    %v764 = vpop.f32.mrb[0].mxu0
    %765 = vdwg.mxu0
    %v767 = vrot.slane %v761, 1
    %v769 = vadd.f32 %v110, %v767
    %v770 = vxor.u32 %v769, 2147483648
    %v771 = vmul.f32 %v770, 1.442695
    %v772 = vpow.pop %v771
    %v773 = vadd.f32 %v772, 1.0
    %v774 = vrcp.pop %v773
    %v775 = vmul.f32 1.0, %v774
    %v776 = vtanh.pop %v769
    %v778 = vrot.slane %v705, 7
    %v780 = vmul.f32 %v775, %v778
    %782 = vrot.lane.b32.xlu0 %v776, 64
    %v783 = vpop.permute.xlu0 %782
    %v785 = vmul.f32 %v775, %v783
    %787 = vrot.lane.b32.xlu0 %v785, 32
    %v788 = vpop.permute.xlu0 %787
    %v790 = vadd.f32 %v780, %v788
    %v791 = vtanh.pop %v790
    %793 = vrot.lane.b32.xlu0 %v791, 64
    %v794 = vpop.permute.xlu0 %793
    %v796 = vmul.f32 %v775, %v794
    %798 = vrot.lane.b32.xlu0 %v796, 32
    %v799 = vpop.permute.xlu0 %798
    %vm801 = vcmask 261127
    %802 = vst.msk [vmem:[#allocation2] sm:$0x80] %vm801, %v799
    // Predicated region
    $region18: #{encoder_forward.1} parent=1 // pred_check
      _
    $region19: #{encoder_forward.1} parent=1 // pred_check_branch
      %804 = sbr.rel (0) target = $region21
    $region20: #{encoder_forward.1} parent=1 // pred_region
      %s806 = ssub.s32 128, 128
      %807 = vsyncadd [#allocation3], %s806
      %s809 = sshll.u32 [#allocation2], 4
      %s810 = int_to_ptr.vmem [resolvable:$true] %s809
      %812 = dma.vmem_to_hbm [thread:$0]  %s810, 128, %s4, [#allocation3]
    $region21: #{encoder_forward.1} parent=1 // pred_fallthru
      _
    // Predicated region
    $region22: #{encoder_forward.1} parent=1 // pred_check
      _
    $region23: #{encoder_forward.1} parent=1 // pred_check_branch
      %814 = sbr.rel (0) target = $region25
    $region24: #{encoder_forward.1} parent=1 // pred_region
      %815 = dma.done [#allocation3], 128
    $region25: #{encoder_forward.1} parent=1 // pred_fallthru
      _
    %816 = vsyncpa [#allocation3], 1

</llo_original>
